<compile_context>
chip_gen: v7x
topology: tpu7x:2x2x1
jax: 0.10.0
libtpu: 0.0.40
codegen_flags: <defaults>
</compile_context>

<pallas_src>
import jax
import jax.numpy as jnp
from jax import lax
from jax.experimental import pallas as pl
from jax.experimental.pallas import tpu as pltpu

_LANE = 128
_ACC_ROWS = 32  # 4 partial-sum quantities x 8 sublanes each


def dice_loss(inputs, targets, weights, *, tile_rows=2048, core_splits=2):
    """inputs: (B, 3, H, W) f32 logits; targets: (B, H, W) int; weights: (1, 3) f32.

    tile_rows:   spatial row-tile cap (rows of 128 pixels).  2048 amortizes per-step
                 overhead on v6e/v7x and still fits v5e once vmem_limit_bytes is set.
    core_splits: spatial split factor marked "parallel" (2 keeps both v7x TCs busy at
                 batch 1; costs nothing on single-core chips because the split is exact
                 up to one masked tail block).
    """
    B, C, H, W = inputs.shape
    assert C == 3, "DiceLoss expects 3 classes"
    N = H * W

    x = inputs.reshape(B, C, N).astype(jnp.float32)   # no-op if already f32
    t = targets.reshape(B, N).astype(jnp.int32)       # int32 kept: no extra HBM cast pass

    rows = max(-(-N // _LANE), 8)
    Np = rows * _LANE
    if Np != N:
        # TODO(synk): only hit when H*W % 128 != 0 (or H*W < 1024); this tail pad still
        # copies the array once.  128-aligned images take the zero-copy path.
        x = jnp.pad(x, ((0, 0), (0, 0), (0, Np - N)))
        t = jnp.pad(t, ((0, 0), (0, Np - N)))
    x = x.reshape(B, C, rows, _LANE)
    t = t.reshape(B, rows, _LANE)

    # ---- spatial tiling: NC core-splits x Kc steps of TR rows (TR % 8 == 0, TR <= rows) ----
    tile_rows = max(8, (int(tile_rows) // 8) * 8)
    NC = max(1, int(core_splits))
    k_target = -(-rows // tile_rows)          # blocks needed at the cap
    k_target = -(-k_target // NC) * NC        # round up to a multiple of the core split
    TR = -(-rows // k_target)                 # balanced block height
    TR = ((TR + 7) // 8) * 8                  # sublane alignment
    TR = min(TR, (rows // 8) * 8)             # never larger than the array's row extent
    n_blocks = -(-rows // TR)                 # in-range block count along the row axis
    Kc = -(-n_blocks // NC)                   # steps per core; over-coverage is masked
    max_blk = n_blocks - 1                    # index_map clamp target (keeps DMA in-bounds)
    blk_pix = TR * _LANE

    def kernel(x_ref, t_ref, out_ref):
        # x_ref: (3, TR, 128) f32   t_ref: (TR, 128) i32   out_ref: (32, 128) f32
        c = pl.program_id(0)
        k = pl.program_id(2)

        @pl.when(k == 0)
        def _init():
            out_ref[...] = jnp.zeros_like(out_ref)

        # Global flat-pixel offset of this (unclamped) step; >= N for duplicate/tail blocks.
        base = (c * Kc + k) * blk_pix

        x0 = x_ref[0]
        x1 = x_ref[1]
        x2 = x_ref[2]
        tt = t_ref[...]

        # Numerically stable 3-way softmax; channel-2 probability is never needed.
        m = jnp.maximum(jnp.maximum(x0, x1), x2)
        e0 = jnp.exp(x0 - m)
        e1 = jnp.exp(x1 - m)
        e2 = jnp.exp(x2 - m)
        s = e0 + e1 + e2
        r = pl.reciprocal(s, approx=True)     # EUP seed (free slot)
        r = r * (2.0 - s * r)                 # one Newton step -> ~f32 accuracy, no divide

        # Validity mask: partial last block, lane tail, and fully-masked clamped blocks.
        row = lax.broadcasted_iota(jnp.int32, (TR, _LANE), 0)
        lane = lax.broadcasted_iota(jnp.int32, (TR, _LANE), 1)
        valid = (row * _LANE + lane) < (N - base)

        # where-selects, not multiplies: garbage/NaN in unread tails cannot leak in.
        p0 = jnp.where(valid, e0 * r, 0.0)
        p1 = jnp.where(valid, e1 * r, 0.0)
        tm = jnp.where(valid, tt, -1)
        is1 = tm == 1                          # mask2rgb channel 0 one-hot
        is2 = tm == 2                          # mask2rgb channel 1 one-hot

        i0 = jnp.where(is1, p0, 0.0)           # intersection contributions
        i1 = jnp.where(is2, p1, 0.0)
        c0 = jnp.where(is1, p0 + 1.0, p0)      # cardinality contributions
        c1 = jnp.where(is2, p1 + 1.0, p1)

        def fold(v):  # (TR,128) -> (8,128): sublane-group adds, pure VPU (no XLU)
            return v.reshape(TR // 8, 8, _LANE).sum(axis=0)

        out_ref[...] += jnp.concatenate(
            [fold(i0), fold(i1), fold(c0), fold(c1)], axis=0)

    out = pl.pallas_call(
        kernel,
        out_shape=jax.ShapeDtypeStruct((NC, B, _ACC_ROWS, _LANE), jnp.float32),
        grid=(NC, B, Kc),
        in_specs=[
            pl.BlockSpec((None, C, TR, _LANE),
                         lambda c, b, k: (b, 0, jnp.minimum(c * Kc + k, max_blk), 0)),
            pl.BlockSpec((None, TR, _LANE),
                         lambda c, b, k: (b, jnp.minimum(c * Kc + k, max_blk), 0)),
        ],
        out_specs=pl.BlockSpec((None, None, _ACC_ROWS, _LANE),
                               lambda c, b, k: (c, b, 0, 0)),
        compiler_params=pltpu.CompilerParams(
            dimension_semantics=("parallel", "parallel", "arbitrary"),
            vmem_limit_bytes=48 * 1024 * 1024),
    )(x, t)

    # Tiny epilogue in plain JAX: fold partials, dice math, weighting, batch mean.
    parts = out.reshape(NC, B, 4, 8 * _LANE).sum(axis=(0, 3))   # (B, 4): i0, i1, c0, c1
    eps = jnp.float32(1e-6)
    w = jnp.asarray(weights, jnp.float32).reshape(-1)
    d0 = 2.0 * parts[:, 0] / (parts[:, 2] + eps)
    d1 = 2.0 * parts[:, 1] / (parts[:, 3] + eps)
    # mask2rgb maps no class to channel 2 -> intersection_2 == 0 -> dice_2 == 0 exactly.
    dice = d0 * w[0] + d1 * w[1]
    return jnp.mean(1.0 - dice)


def _ref_dice_loss(inputs, targets, weights):
    """Pure-JAX reference of the intended forward semantics."""
    p = jax.nn.softmax(inputs.astype(jnp.float32), axis=1)                 # (B,3,H,W)
    oh = jnp.stack(
        [(targets == 1), (targets == 2), jnp.zeros_like(targets, dtype=bool)],
        axis=1,
    ).astype(jnp.float32)                                                  # (B,3,H,W)
    inter = jnp.sum(p * oh, axis=(2, 3))                                   # (B,3)
    card = jnp.sum(p + oh, axis=(2, 3))                                    # (B,3)
    dice = 2.0 * inter / (card + 1e-6)                                     # (B,3)
    dice = jnp.sum(dice * jnp.asarray(weights, jnp.float32).reshape(1, 3), axis=1)
    return jnp.mean(1.0 - dice)


if __name__ == "__main__":
    key = jax.random.PRNGKey(0)
    k1, k2, k3, k4, k5, k6 = jax.random.split(key, 6)

    # deterministic parameter init: module default weights
    weights = jnp.array([[0.4, 0.55, 0.05]], dtype=jnp.float32)
    C = 3

    # 1) tiny shape: single block/core, exercises tail pad fallback, masking, block clamp
    B, H, W = 2, 16, 16
    inputs = jax.random.normal(k1, (B, C, H, W), dtype=jnp.float32)
    targets = jax.random.randint(k2, (B, H, W), 0, 3, dtype=jnp.int32)
    out = jax.block_until_ready(dice_loss(inputs, targets, weights))
    ref = jax.block_until_ready(_ref_dice_loss(inputs, targets, weights))
    assert jnp.allclose(out, ref, rtol=1e-3, atol=1e-3), (out, ref)

    # 2) non-128-aligned spatial size + small tile cap: multi-step (Kc>1) accumulation,
    #    partial last block and lane-tail masking
    B2, H2, W2 = 2, 120, 120
    inputs2 = jax.random.normal(k3, (B2, C, H2, W2), dtype=jnp.float32)
    targets2 = jax.random.randint(k4, (B2, H2, W2), 0, 3, dtype=jnp.int32)
    out2 = jax.block_until_ready(dice_loss(inputs2, targets2, weights, tile_rows=32))
    ref2 = jax.block_until_ready(_ref_dice_loss(inputs2, targets2, weights))
    assert jnp.allclose(out2, ref2, rtol=1e-3, atol=1e-3), (out2, ref2)

    # 3) 128-aligned spatial size: the zero-copy (no jnp.pad) fast path + exact core split
    B3, H3, W3 = 2, 32, 128
    inputs3 = jax.random.normal(k5, (B3, C, H3, W3), dtype=jnp.float32)
    targets3 = jax.random.randint(k6, (B3, H3, W3), 0, 3, dtype=jnp.int32)
    out3 = jax.block_until_ready(dice_loss(inputs3, targets3, weights))
    ref3 = jax.block_until_ready(_ref_dice_loss(inputs3, targets3, weights))
    assert jnp.allclose(out3, ref3, rtol=1e-3, atol=1e-3), (out3, ref3)

    print("KERNEL_OK")
</pallas_src>

<mosaic_0001>
module attributes {stable_mosaic.version = 11 : i64} {
  func.func @kernel(%arg0: i32, %arg1: i32, %arg2: i32, %arg3: memref<1x3x8x128xf32, #tpu.memory_space<vmem>>, %arg4: memref<1x8x128xi32, #tpu.memory_space<vmem>>, %arg5: memref<1x1x32x128xf32, #tpu.memory_space<vmem>>) attributes {dimension_semantics = [#tpu.dimension_semantics<parallel>, #tpu.dimension_semantics<parallel>, #tpu.dimension_semantics<arbitrary>], iteration_bounds = array<i64: 2, 2, 1>, scalar_prefetch = 0 : i64, scratch_operands = 0 : i64, tpu.core_type = #tpu.core_type<tc>, window_params = [{transform_indices = @transform_0, window_bounds = array<i64: 1, 3, 8, 128>}, {transform_indices = @transform_1, window_bounds = array<i64: 1, 8, 128>}, {transform_indices = @transform_2, window_bounds = array<i64: 1, 1, 32, 128>}]} {
    %c0_i32 = arith.constant 0 : i32
    %0 = arith.cmpi eq, %arg2, %c0_i32 : i32
    %1 = arith.extui %0 : i1 to i32
    %c0_i32_0 = arith.constant 0 : i32
    %2 = arith.cmpi ne, %1, %c0_i32_0 : i32
    scf.if %2 {
      %cst_32 = arith.constant 0.000000e+00 : f32
      %74 = vector.broadcast %cst_32 : f32 to vector<32x128xf32>
      %c0_33 = arith.constant 0 : index
      %c0_34 = arith.constant 0 : index
      %c0_35 = arith.constant 0 : index
      %c0_36 = arith.constant 0 : index
      %75 = vector.load %arg5[%c0_33, %c0_34, %c0_35, %c0_36] : memref<1x1x32x128xf32, #tpu.memory_space<vmem>>, vector<1x1x32x128xf32>
      %76 = vector.shape_cast %75 : vector<1x1x32x128xf32> to vector<32x128xf32>
      %77 = vector.shape_cast %74 : vector<32x128xf32> to vector<1x1x32x128xf32>
      tpu.vector_store %arg5[%c0_33, %c0_34, %c0_35, %c0_36], %77 {strides = array<i32>} : memref<1x1x32x128xf32, #tpu.memory_space<vmem>>, vector<1x1x32x128xf32>,
    } else {
    }
    %c1_i32 = arith.constant 1 : i32
    %3 = arith.muli %arg0, %c1_i32 : i32
    %4 = arith.addi %3, %arg2 : i32
    %c1024_i32 = arith.constant 1024 : i32
    %5 = arith.muli %4, %c1024_i32 : i32
    %c0 = arith.constant 0 : index
    %c0_1 = arith.constant 0 : index
    %c0_2 = arith.constant 0 : index
    %c0_3 = arith.constant 0 : index
    %6 = vector.load %arg3[%c0, %c0_1, %c0_2, %c0_3] : memref<1x3x8x128xf32, #tpu.memory_space<vmem>>, vector<1x1x8x128xf32>
    %7 = vector.shape_cast %6 : vector<1x1x8x128xf32> to vector<8x128xf32>
    %c0_4 = arith.constant 0 : index
    %c1 = arith.constant 1 : index
    %c0_5 = arith.constant 0 : index
    %c0_6 = arith.constant 0 : index
    %8 = vector.load %arg3[%c0_4, %c1, %c0_5, %c0_6] : memref<1x3x8x128xf32, #tpu.memory_space<vmem>>, vector<1x1x8x128xf32>
    %9 = vector.shape_cast %8 : vector<1x1x8x128xf32> to vector<8x128xf32>
    %c0_7 = arith.constant 0 : index
    %c2 = arith.constant 2 : index
    %c0_8 = arith.constant 0 : index
    %c0_9 = arith.constant 0 : index
    %10 = vector.load %arg3[%c0_7, %c2, %c0_8, %c0_9] : memref<1x3x8x128xf32, #tpu.memory_space<vmem>>, vector<1x1x8x128xf32>
    %11 = vector.shape_cast %10 : vector<1x1x8x128xf32> to vector<8x128xf32>
    %c0_10 = arith.constant 0 : index
    %c0_11 = arith.constant 0 : index
    %c0_12 = arith.constant 0 : index
    %12 = vector.load %arg4[%c0_10, %c0_11, %c0_12] : memref<1x8x128xi32, #tpu.memory_space<vmem>>, vector<1x8x128xi32>
    %13 = vector.shape_cast %12 : vector<1x8x128xi32> to vector<8x128xi32>
    %14 = arith.maximumf %7, %9 : vector<8x128xf32>
    %15 = arith.maximumf %14, %11 : vector<8x128xf32>
    %16 = arith.subf %7, %15 : vector<8x128xf32>
    %17 = math.exp %16 : vector<8x128xf32>
    %18 = arith.subf %9, %15 : vector<8x128xf32>
    %19 = math.exp %18 : vector<8x128xf32>
    %20 = arith.subf %11, %15 : vector<8x128xf32>
    %21 = math.exp %20 : vector<8x128xf32>
    %22 = arith.addf %17, %19 : vector<8x128xf32>
    %23 = arith.addf %22, %21 : vector<8x128xf32>
    %24 = tpu.reciprocal %23 {approx = true} : vector<8x128xf32> -> vector<8x128xf32>
    %25 = arith.mulf %23, %24 : vector<8x128xf32>
    %cst = arith.constant 2.000000e+00 : f32
    %26 = vector.broadcast %cst : f32 to vector<8x128xf32>
    %27 = arith.subf %26, %25 : vector<8x128xf32>
    %28 = arith.mulf %24, %27 : vector<8x128xf32>
    %29 = tpu.iota {dimensions = array<i32: 0>} : vector<8x128xi32>
    %30 = tpu.iota {dimensions = array<i32: 1>} : vector<8x128xi32>
    %c128_i32 = arith.constant 128 : i32
    %31 = vector.broadcast %c128_i32 : i32 to vector<8x128xi32>
    %32 = arith.muli %29, %31 : vector<8x128xi32>
    %33 = arith.addi %32, %30 : vector<8x128xi32>
    %c256_i32 = arith.constant 256 : i32
    %34 = arith.subi %c256_i32, %5 : i32
    %35 = vector.broadcast %34 : i32 to vector<8x128xi32>
    %36 = arith.cmpi slt, %33, %35 : vector<8x128xi32>
    %37 = arith.mulf %17, %28 : vector<8x128xf32>
    %cst_13 = arith.constant 0.000000e+00 : f32
    %38 = vector.broadcast %cst_13 : f32 to vector<8x128xf32>
    %39 = arith.select %36, %37, %38 : vector<8x128xi1>, vector<8x128xf32>
    %40 = arith.mulf %19, %28 : vector<8x128xf32>
    %cst_14 = arith.constant 0.000000e+00 : f32
    %41 = vector.broadcast %cst_14 : f32 to vector<8x128xf32>
    %42 = arith.select %36, %40, %41 : vector<8x128xi1>, vector<8x128xf32>
    %c-1_i32 = arith.constant -1 : i32
    %43 = vector.broadcast %c-1_i32 : i32 to vector<8x128xi32>
    %44 = arith.select %36, %13, %43 : vector<8x128xi1>, vector<8x128xi32>
    %c1_i32_15 = arith.constant 1 : i32
    %45 = vector.broadcast %c1_i32_15 : i32 to vector<8x128xi32>
    %46 = arith.cmpi eq, %44, %45 : vector<8x128xi32>
    %c2_i32 = arith.constant 2 : i32
    %47 = vector.broadcast %c2_i32 : i32 to vector<8x128xi32>
    %48 = arith.cmpi eq, %44, %47 : vector<8x128xi32>
    %cst_16 = arith.constant 0.000000e+00 : f32
    %49 = vector.broadcast %cst_16 : f32 to vector<8x128xf32>
    %50 = arith.select %46, %39, %49 : vector<8x128xi1>, vector<8x128xf32>
    %cst_17 = arith.constant 0.000000e+00 : f32
    %51 = vector.broadcast %cst_17 : f32 to vector<8x128xf32>
    %52 = arith.select %48, %42, %51 : vector<8x128xi1>, vector<8x128xf32>
    %cst_18 = arith.constant 1.000000e+00 : f32
    %53 = vector.broadcast %cst_18 : f32 to vector<8x128xf32>
    %54 = arith.addf %39, %53 : vector<8x128xf32>
    %55 = arith.select %46, %54, %39 : vector<8x128xi1>, vector<8x128xf32>
    %cst_19 = arith.constant 1.000000e+00 : f32
    %56 = vector.broadcast %cst_19 : f32 to vector<8x128xf32>
    %57 = arith.addf %42, %56 : vector<8x128xf32>
    %58 = arith.select %48, %57, %42 : vector<8x128xi1>, vector<8x128xf32>
    %c0_20 = arith.constant 0 : index
    %c0_21 = arith.constant 0 : index
    %c0_22 = arith.constant 0 : index
    %c0_23 = arith.constant 0 : index
    %59 = vector.load %arg5[%c0_20, %c0_21, %c0_22, %c0_23] : memref<1x1x32x128xf32, #tpu.memory_space<vmem>>, vector<1x1x32x128xf32>
    %60 = vector.shape_cast %59 : vector<1x1x32x128xf32> to vector<32x128xf32>
    %61 = vector.shape_cast %50 : vector<8x128xf32> to vector<1x8x128xf32>
    %cst_24 = arith.constant dense<0.000000e+00> : vector<8x128xf32>
    %62 = vector.multi_reduction <add>, %61, %cst_24 [0] : vector<1x8x128xf32> to vector<8x128xf32>
    %63 = vector.shape_cast %52 : vector<8x128xf32> to vector<1x8x128xf32>
    %cst_25 = arith.constant dense<0.000000e+00> : vector<8x128xf32>
    %64 = vector.multi_reduction <add>, %63, %cst_25 [0] : vector<1x8x128xf32> to vector<8x128xf32>
    %65 = vector.shape_cast %55 : vector<8x128xf32> to vector<1x8x128xf32>
    %cst_26 = arith.constant dense<0.000000e+00> : vector<8x128xf32>
    %66 = vector.multi_reduction <add>, %65, %cst_26 [0] : vector<1x8x128xf32> to vector<8x128xf32>
    %67 = vector.shape_cast %58 : vector<8x128xf32> to vector<1x8x128xf32>
    %cst_27 = arith.constant dense<0.000000e+00> : vector<8x128xf32>
    %68 = vector.multi_reduction <add>, %67, %cst_27 [0] : vector<1x8x128xf32> to vector<8x128xf32>
    %69 = tpu.concatenate %62, %64, %66, %68 in 0 : vector<8x128xf32>, vector<8x128xf32>, vector<8x128xf32>, vector<8x128xf32> -> vector<32x128xf32>
    %70 = arith.addf %60, %69 : vector<32x128xf32>
    %c0_28 = arith.constant 0 : index
    %c0_29 = arith.constant 0 : index
    %c0_30 = arith.constant 0 : index
    %c0_31 = arith.constant 0 : index
    %71 = vector.load %arg5[%c0_28, %c0_29, %c0_30, %c0_31] : memref<1x1x32x128xf32, #tpu.memory_space<vmem>>, vector<1x1x32x128xf32>
    %72 = vector.shape_cast %71 : vector<1x1x32x128xf32> to vector<32x128xf32>
    %73 = vector.shape_cast %70 : vector<32x128xf32> to vector<1x1x32x128xf32>
    tpu.vector_store %arg5[%c0_28, %c0_29, %c0_30, %c0_31], %73 {strides = array<i32>} : memref<1x1x32x128xf32, #tpu.memory_space<vmem>>, vector<1x1x32x128xf32>,
    return
  }
  func.func @transform_0(%arg0: i32, %arg1: i32, %arg2: i32) -> (i32, i32, i32, i32) {
    %c1_i32 = arith.constant 1 : i32
    %0 = arith.muli %arg0, %c1_i32 : i32
    %1 = arith.addi %0, %arg2 : i32
    %c0_i32 = arith.constant 0 : i32
    %2 = arith.minsi %1, %c0_i32 : i32
    %c0_i32_0 = arith.constant 0 : i32
    %c0_i32_1 = arith.constant 0 : i32
    %c0_i32_2 = arith.constant 0 : i32
    return %arg1, %c0_i32_0, %2, %c0_i32_1 : i32, i32, i32, i32
  }
  func.func @transform_1(%arg0: i32, %arg1: i32, %arg2: i32) -> (i32, i32, i32) {
    %c1_i32 = arith.constant 1 : i32
    %0 = arith.muli %arg0, %c1_i32 : i32
    %1 = arith.addi %0, %arg2 : i32
    %c0_i32 = arith.constant 0 : i32
    %2 = arith.minsi %1, %c0_i32 : i32
    %c0_i32_0 = arith.constant 0 : i32
    %c0_i32_1 = arith.constant 0 : i32
    return %arg1, %2, %c0_i32_0 : i32, i32, i32
  }
  func.func @transform_2(%arg0: i32, %arg1: i32, %arg2: i32) -> (i32, i32, i32, i32) {
    %c0_i32 = arith.constant 0 : i32
    %c0_i32_0 = arith.constant 0 : i32
    %c0_i32_1 = arith.constant 0 : i32
    return %arg0, %arg1, %c0_i32, %c0_i32_0 : i32, i32, i32, i32
  }
}

</mosaic_0001>

<llo_original>
// kernel: tpu_custom_call.1
$region0: #{tpu_custom_call.1}
  #allocation0 [shape = 'u32[]', space=smem, size = 0x4, offset = 0x4, fixed_abs, tag = 'smem constant byte address 0x4 - core index']
  #allocation1 [shape = 'u32[144,128]{1,0:T(1,128)}', space=vmem, size = 0x12000, scoped, tag = 'internal scratch']
  %s0 = inlined_call_operand.hbm [shape: f32[2,3,8,128], index: 0, kind: input, shape index: {}]
  %s1 = inlined_call_operand.hbm [shape: s32[2,8,128], index: 1, kind: input, shape index: {}]
  %s2 = inlined_call_operand.hbm [shape: f32[2,2,32,128], index: 2, kind: output, shape index: {}]
  %s3 = sld [smem:[#allocation0]]
  $region53: #{tpu_custom_call.1} parent=0
    _
  %s5 = ssub.s32 1, %s3
  %s6 = scalar_select 0, %s5, %s3
  $region1: #{tpu_custom_call.1} parent=0
    #allocation2 [shape = 'u8[24576]{0}', space=vmem, size = 0x6000, scoped, tag = 'input window, operand 0']
    #allocation3 [shape = 's32[2]{0}', space=sflag, size = 0x8, scoped, tag = 'scoped memory for tpu_custom_call.1']
    #allocation4 [shape = 's32[2]{0}', space=sflag, size = 0x8, scoped, tag = 'scoped memory for tpu_custom_call.1']
    #allocation5 [shape = 'u8[8192]{0}', space=vmem, size = 0x2000, scoped, tag = 'input window, operand 1']
    #allocation6 [shape = 's32[2]{0}', space=sflag, size = 0x8, scoped, tag = 'scoped memory for tpu_custom_call.1']
    #allocation7 [shape = 'u8[32768]{0}', space=vmem, size = 0x8000, scoped, tag = 'output window, operand 0']
    %7 = vsyncpa [#allocation3], 0
    %s8 = scalar_lea.sflag [#allocation3], 1
    %9 = vsyncpa %s8, 0
    %10 = vsyncpa [#allocation6], 0
    %s11 = scalar_lea.sflag [#allocation6], 1
    %12 = vsyncpa %s11, 0
    %13 = vsyncpa [#allocation4], 0
    %s14 = scalar_lea.sflag [#allocation4], 1
    %15 = vsyncpa %s14, 0
    loop: start=0, step=1, limit=6
    $region2: #{tpu_custom_call.1} parent=1 // loop_pre_header
      _
    $region3: #{tpu_custom_call.1} parent=1 // loop_header
      %s17 = sphi 0, %s21
      %p18 = scmp.ge.s32.totalorder %s17, 6
      %s24 = sphi 0, %s43
      %s25 = sphi 0, %s39
      %s26 = sphi 0, %s35
      %s27 = sphi 0, %s24
      %s28 = sphi 0, %s25
      %s29 = sphi 0, %s26
      %s30 = sphi 0, %s27
      %s31 = sphi 0, %s28
      %s32 = sphi 0, %s29
      %s54 = sphi 0, %s56
      %s57 = sphi 0, %s54
      %s58 = sphi 0, %s57
      %s74 = sphi 0, %s58
      %s88 = sphi 0, %s90
      %s91 = sphi 0, %s88
      %s92 = sphi 0, %s91
      %s108 = sphi 0, %s92
      %s116 = sphi 0, %s118
      %s119 = sphi 0, %s116
      %s120 = sphi 0, %s119
      %s136 = sphi 0, %s120
    $region4: #{tpu_custom_call.1} parent=1 // loop_header_branch
      %20 = sbr.rel (%p18) target = $region8
    $region5: #{tpu_custom_call.1} parent=1 // loop_body
      %s22 = ssub.s32 %s17, 1
      %s23 = ssub.s32 %s17, 2
      %s33 = sadd.s32 1, %s26
      %p34 = scmp.ge.s32.totalorder %s33, 1
      %s35 = scalar_select %p34, 0, %s33
      %s36 = sadd.s32 1, %s25
      %s37 = scalar_select %p34, %s36, %s25
      %p38 = scmp.ge.s32.totalorder %s37, 2
      %s39 = scalar_select %p38, 0, %s37
      %s40 = sadd.s32 1, %s24
      %s41 = scalar_select %p38, %s40, %s24
      %p42 = scmp.ge.s32.totalorder %s41, 2
      %s43 = scalar_select %p42, 0, %s41
      %s44 = sadd.s32 %s24, %s26
      %p45 = scmp.lt.s32.totalorder %s44, 0
      %s46 = scalar_select %p45, %s44, 0
      %s47 = sadd.s32 %s43, %s35
      %p48 = scmp.lt.s32.totalorder %s47, 0
      %s49 = scalar_select %p48, %s47, 0
      %s50 = ssub.s32 %s25, %s39
      %s51 = ssub.s32 %s46, %s49
      %s52 = sor.u32 %s50, %s51
      %p53 = scmp.eq.s32.totalorder %s52, 0
      %s55 = sadd.s32 %s54, 1
      %s56 = scalar_select %p53, %s54, %s55
      %p59 = pneg %p53
      %p60 = scmp.eq.s32.totalorder %s17, 3
      %p61 = por %p59, %p60
      %p62 = scmp.ne.s32.totalorder %s54, %s57
      %p63 = scmp.eq.s32.totalorder %s17, 0
      %p64 = por %p62, %p63
      %p65 = scmp.ne.s32.totalorder %s54, %s57
      %p66 = scmp.eq.s32.totalorder %s22, 3
      %p67 = por %p65, %p66
      %p68 = scmp.ne.s32.totalorder %s57, %s58
      %p69 = scmp.eq.s32.totalorder %s22, 0
      %p70 = por %p68, %p69
      %p71 = scmp.ne.s32.totalorder %s57, %s58
      %p72 = scmp.eq.s32.totalorder %s23, 3
      %p73 = por %p71, %p72
      %p75 = scmp.ne.s32.totalorder %s58, %s74
      %p76 = scmp.eq.s32.totalorder %s23, 0
      %p77 = por %p75, %p76
      %s78 = sadd.s32 %s24, %s26
      %p79 = scmp.lt.s32.totalorder %s78, 0
      %s80 = scalar_select %p79, %s78, 0
      %s81 = sadd.s32 %s43, %s35
      %p82 = scmp.lt.s32.totalorder %s81, 0
      %s83 = scalar_select %p82, %s81, 0
      %s84 = ssub.s32 %s25, %s39
      %s85 = ssub.s32 %s80, %s83
      %s86 = sor.u32 %s84, %s85
      %p87 = scmp.eq.s32.totalorder %s86, 0
      %s89 = sadd.s32 %s88, 1
      %s90 = scalar_select %p87, %s88, %s89
      %p93 = pneg %p87
      %p94 = scmp.eq.s32.totalorder %s17, 3
      %p95 = por %p93, %p94
      %p96 = scmp.ne.s32.totalorder %s88, %s91
      %p97 = scmp.eq.s32.totalorder %s17, 0
      %p98 = por %p96, %p97
      %p99 = scmp.ne.s32.totalorder %s88, %s91
      %p100 = scmp.eq.s32.totalorder %s22, 3
      %p101 = por %p99, %p100
      %p102 = scmp.ne.s32.totalorder %s91, %s92
      %p103 = scmp.eq.s32.totalorder %s22, 0
      %p104 = por %p102, %p103
      %p105 = scmp.ne.s32.totalorder %s91, %s92
      %p106 = scmp.eq.s32.totalorder %s23, 3
      %p107 = por %p105, %p106
      %p109 = scmp.ne.s32.totalorder %s92, %s108
      %p110 = scmp.eq.s32.totalorder %s23, 0
      %p111 = por %p109, %p110
      %s112 = ssub.s32 %s24, %s43
      %s113 = ssub.s32 %s25, %s39
      %s114 = sor.u32 %s112, %s113
      %p115 = scmp.eq.s32.totalorder %s114, 0
      %s117 = sadd.s32 %s116, 1
      %s118 = scalar_select %p115, %s116, %s117
      %p121 = pneg %p115
      %p122 = scmp.eq.s32.totalorder %s17, 3
      %p123 = por %p121, %p122
      %p124 = scmp.ne.s32.totalorder %s116, %s119
      %p125 = scmp.eq.s32.totalorder %s17, 0
      %p126 = por %p124, %p125
      %p127 = scmp.ne.s32.totalorder %s116, %s119
      %p128 = scmp.eq.s32.totalorder %s22, 3
      %p129 = por %p127, %p128
      %p130 = scmp.ne.s32.totalorder %s119, %s120
      %p131 = scmp.eq.s32.totalorder %s22, 0
      %p132 = por %p130, %p131
      %p133 = scmp.ne.s32.totalorder %s119, %s120
      %p134 = scmp.eq.s32.totalorder %s23, 3
      %p135 = por %p133, %p134
      %p137 = scmp.ne.s32.totalorder %s120, %s136
      %p138 = scmp.eq.s32.totalorder %s23, 0
      %p139 = por %p137, %p138
      %p140 = scmp.le.s32.totalorder 1, %s17
      %p141 = scmp.lt.s32.totalorder %s17, 5
      %p142 = pnand %p140, %p141
      %p143 = pneg %p142
      // Predicated region
      $region9: #{tpu_custom_call.1} parent=5 // pred_check
        _
      $region10: #{tpu_custom_call.1} parent=5 // pred_check_branch
        %145 = sbr.rel (%p142) target = $region12
      $region11: #{tpu_custom_call.1} parent=5 // pred_region
        %s146 = ssub.s32 %s17, 1
      $region12: #{tpu_custom_call.1} parent=5 // pred_fallthru
        _
      %p147 = scmp.lt.s32.totalorder %s17, 4
      // Predicated region
      $region13: #{tpu_custom_call.1} parent=5 // pred_check
        %p148 = pneg %p147
      $region14: #{tpu_custom_call.1} parent=5 // pred_check_branch
        %150 = sbr.rel (%p148) target = $region16
      $region15: #{tpu_custom_call.1} parent=5 // pred_region
        // Predicated region
        $region17: #{tpu_custom_call.1} parent=15 // pred_check
          %p151 = pneg %p64
        $region18: #{tpu_custom_call.1} parent=15 // pred_check_branch
          %153 = sbr.rel (%p151) target = $region20
        $region19: #{tpu_custom_call.1} parent=15 // pred_region
          %s154 = sand.u32 %s54, 1
          %s155 = scalar_lea.sflag [#allocation3], %s154
          %s156 = sand.u32 %s54, 1
          %s157 = smul.addr %s156, 24
          %s158 = scalar_lea.vmem [#allocation2], %s157
          %s159 = sadd.s32 %s24, %s26
          %p160 = scmp.lt.s32.totalorder %s159, 0
          %s161 = scalar_select %p160, %s159, 0
          %s163 = ssub.s32 384, 384
          %164 = vsyncadd %s155, %s163
          %s165 = smul.addr %s25, 3
          %s166 = sadd.s32 %s161, %s165
          %s167 = smul.addr %s166, 128
          %s168 = scalar_lea.hbm %s0, %s167
          %s169 = sshll.u32 %s158, 4
          %s170 = int_to_ptr.vmem [resolvable:$true] %s169
          %175 = dma.hbm_to_vmem [thread:$0]  %s168, 384, %s170, %s155, 128, 128, 8
        $region20: #{tpu_custom_call.1} parent=15 // pred_fallthru
          _
        // Predicated region
        $region21: #{tpu_custom_call.1} parent=15 // pred_check
          %p176 = pneg %p98
        $region22: #{tpu_custom_call.1} parent=15 // pred_check_branch
          %178 = sbr.rel (%p176) target = $region24
        $region23: #{tpu_custom_call.1} parent=15 // pred_region
          %s179 = sand.u32 %s88, 1
          %s180 = scalar_lea.sflag [#allocation6], %s179
          %s181 = sand.u32 %s88, 1
          %s182 = smul.addr %s181, 8
          %s183 = scalar_lea.vmem [#allocation5], %s182
          %s184 = sadd.s32 %s24, %s26
          %p185 = scmp.lt.s32.totalorder %s184, 0
          %s186 = scalar_select %p185, %s184, 0
          %s188 = ssub.s32 128, 128
          %189 = vsyncadd %s180, %s188
          %s190 = sadd.s32 %s186, %s25
          %s191 = smul.addr %s190, 128
          %s192 = scalar_lea.hbm %s1, %s191
          %s194 = sshll.u32 %s183, 4
          %s195 = int_to_ptr.vmem [resolvable:$true] %s194
          %197 = dma.hbm_to_vmem [thread:$0]  %s192, 128, %s195, %s180
        $region24: #{tpu_custom_call.1} parent=15 // pred_fallthru
          _
      $region16: #{tpu_custom_call.1} parent=5 // pred_fallthru
        _
      %p198 = scmp.le.s32.totalorder 1, %s17
      %p199 = scmp.lt.s32.totalorder %s17, 5
      %p200 = pnand %p198, %p199
      %p201 = pneg %p200
      // Predicated region
      $region25: #{tpu_custom_call.1} parent=5 // pred_check
        _
      $region26: #{tpu_custom_call.1} parent=5 // pred_check_branch
        %203 = sbr.rel (%p200) target = $region28
      $region27: #{tpu_custom_call.1} parent=5 // pred_region
        %s204 = ssub.s32 %s17, 1
        %s205 = sand.u32 %s57, 1
        %s206 = scalar_lea.sflag [#allocation3], %s205
        %s207 = sand.u32 %s57, 1
        %s208 = smul.addr %s207, 24
        %s209 = scalar_lea.vmem [#allocation2], %s208
        // Predicated region
        $region29: #{tpu_custom_call.1} parent=27 // pred_check
          %p210 = pneg %p70
        $region30: #{tpu_custom_call.1} parent=27 // pred_check_branch
          %212 = sbr.rel (%p210) target = $region32
        $region31: #{tpu_custom_call.1} parent=27 // pred_region
          %213 = dma.done %s206, 384
        $region32: #{tpu_custom_call.1} parent=27 // pred_fallthru
          _
        %s214 = sand.u32 %s91, 1
        %s215 = scalar_lea.sflag [#allocation6], %s214
        %s216 = sand.u32 %s91, 1
        %s217 = smul.addr %s216, 8
        %s218 = scalar_lea.vmem [#allocation5], %s217
        // Predicated region
        $region33: #{tpu_custom_call.1} parent=27 // pred_check
          %p219 = pneg %p104
        $region34: #{tpu_custom_call.1} parent=27 // pred_check_branch
          %221 = sbr.rel (%p219) target = $region36
        $region35: #{tpu_custom_call.1} parent=27 // pred_region
          %222 = dma.done %s215, 128
        $region36: #{tpu_custom_call.1} parent=27 // pred_fallthru
          _
        %s223 = sand.u32 %s57, 1
        %s224 = scalar_lea.sflag [#allocation3], %s223
        %s225 = sand.u32 %s57, 1
        %s226 = smul.addr %s225, 24
        %s227 = scalar_lea.vmem [#allocation2], %s226
        %p228 = pneg %p70
        %p229 = pneg %p67
        %s230 = sand.u32 %s91, 1
        %s231 = scalar_lea.sflag [#allocation6], %s230
        %s232 = sand.u32 %s91, 1
        %s233 = smul.addr %s232, 8
        %s234 = scalar_lea.vmem [#allocation5], %s233
        %p235 = pneg %p104
        %p236 = pneg %p101
        %p237 = pneg %p132
        %p238 = pneg %p129
        %s239 = sand.u32 %s119, 1
        %s240 = scalar_lea.sflag [#allocation4], %s239
        %s241 = sand.u32 %s119, 1
        %s242 = smul.addr %s241, 32
        %s243 = scalar_lea.vmem [#allocation7], %s242
        %s244 = sadd.s32 %s27, %s29
        %p245 = scmp.lt.s32.totalorder %s244, 0
        %s246 = scalar_select %p245, %s244, 0
        %s247 = sadd.s32 %s27, %s29
        %p248 = scmp.lt.s32.totalorder %s247, 0
        %s249 = scalar_select %p248, %s247, 0
        %p250 = scmp.eq.s32.totalorder %s29, 0
        // Predicated region
        $region37: #{tpu_custom_call.1} parent=27 // pred_check
          %p251 = pneg %p250
        $region38: #{tpu_custom_call.1} parent=27 // pred_check_branch
          %253 = sbr.rel (%p251) target = $region40
        $region39: #{tpu_custom_call.1} parent=27 // pred_region
          %254 = vst [vmem:[%s243] sm:$0xff] 0.0
          %255 = vst [vmem:[%s243 + $0x8] sm:$0xff] 0.0
          %256 = vst [vmem:[%s243 + $0x10] sm:$0xff] 0.0
          %257 = vst [vmem:[%s243 + $0x18] sm:$0xff] 0.0
        $region40: #{tpu_custom_call.1} parent=27 // pred_fallthru
          _
        %s258 = sadd.s32 %s27, %s29
        %s259 = smul.u32 %s258, 1024
        %v260 = vld [vmem:[%s209] sm:$0xff]
        %s261 = scalar_lea.vmem %s209, 8 [#allocation2]
        %v262 = vld [vmem:[%s261] sm:$0xff]
        %s263 = scalar_lea.vmem %s209, 16 [#allocation2]
        %v264 = vld [vmem:[%s263] sm:$0xff]
        %v265 = vld [vmem:[%s218] sm:$0xff]
        %v266 = vmax.f32 %v260, %v262
        %v267 = vmax.f32 %v266, %v264
        %v268 = vsub.f32 %v260, %v267
        %v269 = vmul.f32 %v268, 1.442695
        %v270 = vpow.pop %v269
        %v271 = vsub.f32 %v262, %v267
        %v272 = vmul.f32 %v271, 1.442695
        %v273 = vpow.pop %v272
        %v274 = vsub.f32 %v264, %v267
        %v275 = vmul.f32 %v274, 1.442695
        %v276 = vpow.pop %v275
        %v277 = vadd.f32 %v270, %v273
        %v278 = vadd.f32 %v277, %v276
        %v279 = vrcp.pop %v278
        %v280 = vmul.f32 %v278, %v279
        %v281 = vsub.f32 2.0, %v280
        %v282 = vmul.f32 %v279, %v281
        %v283 = vlaneseq
        %v284 = vshrl.u32 %v283, 7
        %v285 = vlaneseq
        %v286 = vand.u32 %v285, 127
        %v287 = vmul.u32 %v284, 128
        %v288 = vadd.s32 %v287, %v286
        %s289 = ssub.s32 256, %s259
        %v290 = vstv %s289
        %vm291 = vcmp.lt.s32.totalorder %v288, %v290
        %v292 = vmul.f32 %v270, %v282
        %v293 = vsel %vm291, %v292, 0.0
        %v294 = vmul.f32 %v273, %v282
        %v295 = vsel %vm291, %v294, 0.0
        %v296 = vsel %vm291, %v265, 4294967295
        %vm297 = vcmp.eq.s32.totalorder %v296, 1
        %vm298 = vcmp.eq.s32.totalorder %v296, 2
        %v299 = vsel %vm297, %v293, 0.0
        %v300 = vsel %vm298, %v295, 0.0
        %v301 = vadd.f32 %v293, 1.0
        %v302 = vsel %vm297, %v301, %v293
        %v303 = vadd.f32 %v295, 1.0
        %v304 = vsel %vm298, %v303, %v295
        %v305 = vld [vmem:[%s243] sm:$0xff]
        %v306 = vld [vmem:[%s243 + $0x8] sm:$0xff]
        %v307 = vld [vmem:[%s243 + $0x10] sm:$0xff]
        %v308 = vld [vmem:[%s243 + $0x18] sm:$0xff]
        %v309 = vadd.f32 %v299, 0.0
        %v310 = vadd.f32 %v300, 0.0
        %v311 = vadd.f32 %v302, 0.0
        %v312 = vadd.f32 %v304, 0.0
        %v313 = vadd.f32 %v305, %v309
        %v314 = vadd.f32 %v306, %v310
        %v315 = vadd.f32 %v307, %v311
        %v316 = vadd.f32 %v308, %v312
        %317 = vst [vmem:[%s243] sm:$0xff] %v313
        %318 = vst [vmem:[%s243 + $0x8] sm:$0xff] %v314
        %319 = vst [vmem:[%s243 + $0x10] sm:$0xff] %v315
        %320 = vst [vmem:[%s243 + $0x18] sm:$0xff] %v316
        %s321 = sand.u32 %s119, 1
        %s322 = scalar_lea.sflag [#allocation4], %s321
        %s323 = sand.u32 %s119, 1
        %s324 = smul.addr %s323, 32
        %s325 = scalar_lea.vmem [#allocation7], %s324
        // Predicated region
        $region41: #{tpu_custom_call.1} parent=27 // pred_check
          %p326 = pneg %p129
        $region42: #{tpu_custom_call.1} parent=27 // pred_check_branch
          %328 = sbr.rel (%p326) target = $region44
        $region43: #{tpu_custom_call.1} parent=27 // pred_region
          %s330 = ssub.s32 512, 512
          %331 = vsyncadd %s322, %s330
          %s332 = smul.addr %s28, 4
          %s333 = smul.addr %s27, 8
          %s334 = sadd.s32 %s332, %s333
          %s335 = smul.addr %s334, 128
          %s336 = scalar_lea.hbm %s2, %s335
          %s337 = sshll.u32 %s325, 4
          %s338 = int_to_ptr.vmem [resolvable:$true] %s337
          %343 = dma.vmem_to_hbm [thread:$0]  %s338, 512, %s336, %s322, 128, 128, 8
        $region44: #{tpu_custom_call.1} parent=27 // pred_fallthru
          _
      $region28: #{tpu_custom_call.1} parent=5 // pred_fallthru
        _
      %p344 = scmp.le.s32.totalorder 2, %s17
      // Predicated region
      $region45: #{tpu_custom_call.1} parent=5 // pred_check
        %p345 = pneg %p344
      $region46: #{tpu_custom_call.1} parent=5 // pred_check_branch
        %347 = sbr.rel (%p345) target = $region48
      $region47: #{tpu_custom_call.1} parent=5 // pred_region
        %s348 = ssub.s32 %s17, 2
        // Predicated region
        $region49: #{tpu_custom_call.1} parent=47 // pred_check
          %p349 = pneg %p135
        $region50: #{tpu_custom_call.1} parent=47 // pred_check_branch
          %351 = sbr.rel (%p349) target = $region52
        $region51: #{tpu_custom_call.1} parent=47 // pred_region
          %s352 = sand.u32 %s120, 1
          %s353 = scalar_lea.sflag [#allocation4], %s352
          %s354 = sand.u32 %s120, 1
          %s355 = smul.addr %s354, 32
          %s356 = scalar_lea.vmem [#allocation7], %s355
          %357 = dma.done %s353, 512
        $region52: #{tpu_custom_call.1} parent=47 // pred_fallthru
          _
      $region48: #{tpu_custom_call.1} parent=5 // pred_fallthru
        _
    $region6: #{tpu_custom_call.1} parent=1 // loop_footer
      %s21 = sadd.s32 1, %s17
    $region7: #{tpu_custom_call.1} parent=1 // loop_footer_branch
      %16 = sbr.rel target = $region3
    $region8: #{tpu_custom_call.1} parent=1 // loop_exit
      _
    %358 = vsyncpa [#allocation3], 1
    %s359 = scalar_lea.sflag [#allocation3], 1
    %360 = vsyncpa %s359, 1
    %361 = vsyncpa [#allocation6], 1
    %s362 = scalar_lea.sflag [#allocation6], 1
    %363 = vsyncpa %s362, 1
    %364 = vsyncpa [#allocation4], 1
    %s365 = scalar_lea.sflag [#allocation4], 1
    %366 = vsyncpa %s365, 1

</llo_original>
